<compile_context>
chip_gen: v5e
topology: v5e:2x2
jax: 0.10.0
libtpu: 0.0.40
codegen_flags: <defaults>
</compile_context>

<pallas_src>
import jax
import jax.numpy as jnp
from jax import lax
from jax.experimental import pallas as pl
from jax.experimental.pallas import tpu as pltpu


# --------------------------------------------------------------------------- #
# In-kernel math.  State is augmented feature-major: ys = (8, TB) with         #
#   ys[0] = y0, ys[1] = y1, ys[2] = 1, ys[3:8] = 0  (batch on lanes).          #
# Packed weights:                                                              #
#   W1a (50, 8)  = [W1 | b1 | 0...]          -> h1 = tanh(W1a @ ys)            #
#   W2  (50, 50), b2c (50, 1)                -> h2 = tanh(W2 @ h1 + b2)        #
#   W3a (8, 50)  = [W3 ; 0...]                                                 #
#   A   (8, 8)   with A[0,1]=1, A[1,0]=-1, A[0,2]=b3[0], A[1,2]=b3[1]          #
#   dy  = W3a @ h2 + A @ ys   (rows 2..7 are exactly 0, so the augmented       #
#                              state can be stepped directly by any solver)    #
# --------------------------------------------------------------------------- #
def _vdp_rhs(ys, w1a, w2, b2b, w3a, amat):
    h1 = jnp.tanh(jnp.dot(w1a, ys, preferred_element_type=jnp.float32))   # (50, TB)
    h2 = jnp.tanh(jnp.dot(w2, h1, preferred_element_type=jnp.float32) + b2b)
    return (jnp.dot(w3a, h2, preferred_element_type=jnp.float32)
            + jnp.dot(amat, ys, preferred_element_type=jnp.float32))      # (8, TB)


def odefunc_kernel(ys_ref, w1a_ref, w2_ref, b2_ref, w3a_ref, a_ref, o_ref):
    """Single RHS evaluation (== ODEFunc.forward) on one batch tile."""
    ys = ys_ref[...].astype(jnp.float32)
    tb = ys_ref.shape[-1]
    b2b = jnp.broadcast_to(b2_ref[...], (b2_ref.shape[0], tb))
    dy = _vdp_rhs(ys, w1a_ref[...], w2_ref[...], b2b, w3a_ref[...], a_ref[...])
    o_ref[...] = dy.astype(o_ref.dtype)


def make_rk4_kernel(n_steps, dt, unroll=4):
    """Fused classic-RK4 integrator: weights stay resident in VMEM and the whole
    time loop runs inside one kernel.  Small step counts are fully unrolled so
    the scheduler overlaps MXU/EUP/VPU work across consecutive RHS calls."""
    n_steps = int(n_steps)
    dt = float(dt)
    unroll = max(1, int(unroll))

    def rk4_kernel(ys_ref, w1a_ref, w2_ref, b2_ref, w3a_ref, a_ref, o_ref):
        w1a = w1a_ref[...]
        w2 = w2_ref[...]
        w3a = w3a_ref[...]
        amat = a_ref[...]
        tb = ys_ref.shape[-1]
        # Hoisted once per kernel invocation (NOT re-broadcast every RHS call).
        b2b = jnp.broadcast_to(b2_ref[...], (b2_ref.shape[0], tb))

        def rhs(y):
            return _vdp_rhs(y, w1a, w2, b2b, w3a, amat)

        def step(y):
            k1 = rhs(y)
            k2 = rhs(y + (0.5 * dt) * k1)
            k3 = rhs(y + (0.5 * dt) * k2)
            k4 = rhs(y + dt * k3)
            return y + (dt / 6.0) * (k1 + 2.0 * k2 + 2.0 * k3 + k4)

        ys = ys_ref[...].astype(jnp.float32)
        if n_steps <= 32:
            # Full unroll at trace time: maximum cross-step scheduling freedom.
            for _ in range(n_steps):
                ys = step(ys)
        else:
            # Block-unrolled fori_loop for long horizons.
            def body(_, y):
                for _ in range(unroll):
                    y = step(y)
                return y
            ys = lax.fori_loop(0, n_steps // unroll, body, ys)
            for _ in range(n_steps % unroll):
                ys = step(ys)
        o_ref[...] = ys.astype(o_ref.dtype)

    return rk4_kernel


# --------------------------------------------------------------------------- #
# Packing / layout helpers                                                     #
# --------------------------------------------------------------------------- #
def _round_up(x, m):
    return (x + m - 1) // m * m


def _choose_tile(b_pad, tile_b):
    """Largest 128-multiple tile <= tile_b that divides b_pad, keeping >= 2 grid
    steps whenever b_pad >= 256 (so v7x's two TensorCores both get work)."""
    best = 128
    for cand in range(128, min(int(tile_b), b_pad) + 1, 128):
        if b_pad % cand != 0:
            continue
        if b_pad >= 256 and b_pad // cand < 2:
            continue
        best = cand
    return best


def pack_params(params):
    """PyTorch-layout params -> MXU-friendly packed weights (biases + vdp folded)."""
    W1, b1, W2, b2, W3, b3 = params
    f32 = jnp.float32
    H = W1.shape[0]                                   # 50
    W1a = jnp.zeros((H, 8), f32)
    W1a = W1a.at[:, 0:2].set(W1.astype(f32)).at[:, 2].set(b1.astype(f32))
    b2c = b2.astype(f32)[:, None]                     # (50, 1)
    W3a = jnp.zeros((8, W3.shape[1]), f32).at[0:2, :].set(W3.astype(f32))
    A = jnp.zeros((8, 8), f32)
    A = A.at[0, 1].set(1.0).at[1, 0].set(-1.0)        # vdp = [y1, -y0]
    A = A.at[0, 2].set(b3[0].astype(f32)).at[1, 2].set(b3[1].astype(f32))
    return (W1a, W2.astype(f32), b2c, W3a, A)


def prepare_state_fm(y, pad_to=None):
    """(B, 2) -> augmented feature-major state (8, B_pad); batch padded only to
    a multiple of 128 (never to a multiple of the tile)."""
    B = y.shape[0]
    b_pad = _round_up(max(B, 1), 128) if pad_to is None else int(pad_to)
    ys = jnp.zeros((8, b_pad), jnp.float32)
    ys = ys.at[0:2, :B].set(jnp.transpose(y).astype(jnp.float32))
    ys = ys.at[2, :].set(1.0)
    return ys


def _pallas_fm_call(kernel, ys_fm, packed, tile_b):
    """Batch-gridded pallas_call; weights stay resident across the grid."""
    w1a, w2, b2c, w3a, amat = packed
    b_pad = ys_fm.shape[1]
    tb = _choose_tile(b_pad, tile_b)

    return pl.pallas_call(
        kernel,
        out_shape=jax.ShapeDtypeStruct((8, b_pad), jnp.float32),
        grid_spec=pltpu.PrefetchScalarGridSpec(
            num_scalar_prefetch=0,
            grid=(b_pad // tb,),
            in_specs=[
                pl.BlockSpec((8, tb), lambda i: (0, i)),       # state tile
                pl.BlockSpec(w1a.shape, lambda i: (0, 0)),     # weights stay
                pl.BlockSpec(w2.shape, lambda i: (0, 0)),      # resident across
                pl.BlockSpec(b2c.shape, lambda i: (0, 0)),     # the batch grid
                pl.BlockSpec(w3a.shape, lambda i: (0, 0)),
                pl.BlockSpec(amat.shape, lambda i: (0, 0)),
            ],
            out_specs=pl.BlockSpec((8, tb), lambda i: (0, i)),
        ),
        compiler_params=pltpu.CompilerParams(
            dimension_semantics=("parallel",)),                # megacore on v7x
    )(ys_fm, w1a, w2, b2c, w3a, amat)


# --------------------------------------------------------------------------- #
# Public wrappers                                                              #
# --------------------------------------------------------------------------- #
def ode_func_fm(t, ys_fm, packed, tile_b=256):
    """RHS in the augmented feature-major layout (8, B_pad) -> (8, B_pad).
    Rows 2..7 of the result are exactly zero, so external solvers can step the
    augmented state directly (no per-call transpose/pad round trips)."""
    del t
    return _pallas_fm_call(odefunc_kernel, ys_fm, packed, tile_b)


def ode_func(t, y, params, tile_b=256):
    """JAX/Pallas equivalent of ODEFunc.forward(t, y); y is (B, 2)."""
    del t  # unused, as in the PyTorch module
    B = y.shape[0]
    dy_fm = _pallas_fm_call(odefunc_kernel, prepare_state_fm(y),
                            pack_params(params), tile_b)
    return jnp.transpose(dy_fm[0:2, :B]).astype(y.dtype)


def ode_solve_rk4(y, params, dt, n_steps, tile_b=256):
    """Integrate dy/dt = ODEFunc(t, y) with classic RK4, fully fused in-kernel
    (one launch, one weight DMA, weights resident in VMEM for all steps)."""
    B = y.shape[0]
    kernel = make_rk4_kernel(n_steps, dt)
    out_fm = _pallas_fm_call(kernel, prepare_state_fm(y),
                             pack_params(params), tile_b)
    return jnp.transpose(out_fm[0:2, :B]).astype(y.dtype)


# --------------------------------------------------------------------------- #
# Init + pure-JAX references                                                   #
# --------------------------------------------------------------------------- #
def init_params(key):
    """Matches nn.init.normal_(std=0.1) / constant_(0); PyTorch (out, in) layout."""
    k1, k2, k3 = jax.random.split(key, 3)
    W1 = 0.1 * jax.random.normal(k1, (50, 2), dtype=jnp.float32)
    b1 = jnp.zeros((50,), dtype=jnp.float32)
    W2 = 0.1 * jax.random.normal(k2, (50, 50), dtype=jnp.float32)
    b2 = jnp.zeros((50,), dtype=jnp.float32)
    W3 = 0.1 * jax.random.normal(k3, (2, 50), dtype=jnp.float32)
    b3 = jnp.zeros((2,), dtype=jnp.float32)
    return (W1, b1, W2, b2, W3, b3)


def ode_func_ref(t, y, params):
    del t
    W1, b1, W2, b2, W3, b3 = params
    hp = lax.Precision.HIGHEST
    h = jnp.tanh(jnp.dot(y, W1.T, precision=hp) + b1)
    h = jnp.tanh(jnp.dot(h, W2.T, precision=hp) + b2)
    net = jnp.dot(h, W3.T, precision=hp) + b3
    vdp = jnp.stack([y[..., 1], -y[..., 0]], axis=-1)
    return vdp + net


def rk4_solve_ref(y, params, dt, n_steps):
    def rhs(y_):
        return ode_func_ref(0.0, y_, params)
    for _ in range(n_steps):
        k1 = rhs(y)
        k2 = rhs(y + 0.5 * dt * k1)
        k3 = rhs(y + 0.5 * dt * k2)
        k4 = rhs(y + dt * k3)
        y = y + (dt / 6.0) * (k1 + 2.0 * k2 + 2.0 * k3 + k4)
    return y


# --------------------------------------------------------------------------- #
if __name__ == "__main__":
    key = jax.random.PRNGKey(0)
    pkey, ykey = jax.random.split(key)

    params = init_params(pkey)
    B = 8
    y = jax.random.normal(ykey, (B, 2), dtype=jnp.float32)
    t = jnp.float32(0.0)  # unused by forward, kept for API parity

    # 1) Single RHS evaluation == the module's forward pass.
    out = jax.block_until_ready(ode_func(t, y, params))
    ref = ode_func_ref(t, y, params)
    assert out.shape == (B, 2), out.shape
    assert jnp.allclose(out, ref, atol=1e-3, rtol=1e-3), (out, ref)

    # 2) Fused RK4 solve: whole time loop in one kernel, weights resident in VMEM.
    n_steps, dt = 10, 0.05
    out_rk4 = jax.block_until_ready(ode_solve_rk4(y, params, dt, n_steps))
    ref_rk4 = rk4_solve_ref(y, params, dt, n_steps)
    assert out_rk4.shape == (B, 2), out_rk4.shape
    assert jnp.allclose(out_rk4, ref_rk4, atol=1e-3, rtol=1e-3), (out_rk4, ref_rk4)

    # 3) Feature-major API (for external solvers that want to avoid per-call
    #    transpose/pad round trips).
    packed = pack_params(params)
    ys_fm = prepare_state_fm(y)
    dy_fm = jax.block_until_ready(ode_func_fm(t, ys_fm, packed))
    assert jnp.allclose(jnp.transpose(dy_fm[0:2, :B]), ref, atol=1e-3, rtol=1e-3)

    print("KERNEL_OK")
</pallas_src>

<mosaic_0001>
module attributes {stable_mosaic.version = 11 : i64} {
  func.func @odefunc_kernel(%arg0: i32, %arg1: memref<8x128xf32, #tpu.memory_space<vmem>>, %arg2: memref<50x8xf32, #tpu.memory_space<vmem>>, %arg3: memref<50x50xf32, #tpu.memory_space<vmem>>, %arg4: memref<50x1xf32, #tpu.memory_space<vmem>>, %arg5: memref<8x50xf32, #tpu.memory_space<vmem>>, %arg6: memref<8x8xf32, #tpu.memory_space<vmem>>, %arg7: memref<8x128xf32, #tpu.memory_space<vmem>>) attributes {dimension_semantics = [#tpu.dimension_semantics<parallel>], iteration_bounds = array<i64: 1>, scalar_prefetch = 0 : i64, scratch_operands = 0 : i64, tpu.core_type = #tpu.core_type<tc>, window_params = [{transform_indices = @transform_0, window_bounds = array<i64: 8, 128>}, {pipeline_mode = #tpu.pipeline_mode<synchronous>, transform_indices = @transform_1, window_bounds = array<i64: 50, 8>}, {pipeline_mode = #tpu.pipeline_mode<synchronous>, transform_indices = @transform_2, window_bounds = array<i64: 50, 50>}, {pipeline_mode = #tpu.pipeline_mode<synchronous>, transform_indices = @transform_3, window_bounds = array<i64: 50, 1>}, {pipeline_mode = #tpu.pipeline_mode<synchronous>, transform_indices = @transform_4, window_bounds = array<i64: 8, 50>}, {pipeline_mode = #tpu.pipeline_mode<synchronous>, transform_indices = @transform_5, window_bounds = array<i64: 8, 8>}, {transform_indices = @transform_6, window_bounds = array<i64: 8, 128>}]} {
    %c0 = arith.constant 0 : index
    %c0_0 = arith.constant 0 : index
    %0 = vector.load %arg1[%c0, %c0_0] : memref<8x128xf32, #tpu.memory_space<vmem>>, vector<8x128xf32>
    %c0_1 = arith.constant 0 : index
    %c0_2 = arith.constant 0 : index
    %1 = vector.load %arg4[%c0_1, %c0_2] : memref<50x1xf32, #tpu.memory_space<vmem>>, vector<50x1xf32>
    %2 = vector.shape_cast %1 : vector<50x1xf32> to vector<50x1xf32>
    %3 = vector.broadcast %2 : vector<50x1xf32> to vector<50x128xf32>
    %c0_3 = arith.constant 0 : index
    %c0_4 = arith.constant 0 : index
    %4 = vector.load %arg2[%c0_3, %c0_4] : memref<50x8xf32, #tpu.memory_space<vmem>>, vector<50x8xf32>
    %c0_5 = arith.constant 0 : index
    %c0_6 = arith.constant 0 : index
    %5 = vector.load %arg3[%c0_5, %c0_6] : memref<50x50xf32, #tpu.memory_space<vmem>>, vector<50x50xf32>
    %c0_7 = arith.constant 0 : index
    %c0_8 = arith.constant 0 : index
    %6 = vector.load %arg5[%c0_7, %c0_8] : memref<8x50xf32, #tpu.memory_space<vmem>>, vector<8x50xf32>
    %c0_9 = arith.constant 0 : index
    %c0_10 = arith.constant 0 : index
    %7 = vector.load %arg6[%c0_9, %c0_10] : memref<8x8xf32, #tpu.memory_space<vmem>>, vector<8x8xf32>
    %cst = arith.constant dense<0.000000e+00> : vector<50x128xf32>
    %8 = tpu.matmul %4, %0, %cst {dimension_numbers = #tpu.dot_dimension_numbers<[1], [0], [0], [1], [0, 0, 1, 1], [], []>} : vector<50x8xf32>, vector<8x128xf32>, vector<50x128xf32> -> vector<50x128xf32>
    %9 = math.tanh %8 : vector<50x128xf32>
    %cst_11 = arith.constant dense<0.000000e+00> : vector<50x128xf32>
    %10 = tpu.matmul %5, %9, %cst_11 {dimension_numbers = #tpu.dot_dimension_numbers<[1], [0], [0], [1], [0, 0, 1, 1], [], []>} : vector<50x50xf32>, vector<50x128xf32>, vector<50x128xf32> -> vector<50x128xf32>
    %11 = arith.addf %10, %3 : vector<50x128xf32>
    %12 = math.tanh %11 : vector<50x128xf32>
    %cst_12 = arith.constant dense<0.000000e+00> : vector<8x128xf32>
    %13 = tpu.matmul %6, %12, %cst_12 {dimension_numbers = #tpu.dot_dimension_numbers<[1], [0], [0], [1], [0, 0, 1, 1], [], []>} : vector<8x50xf32>, vector<50x128xf32>, vector<8x128xf32> -> vector<8x128xf32>
    %cst_13 = arith.constant dense<0.000000e+00> : vector<8x128xf32>
    %14 = tpu.matmul %7, %0, %cst_13 {dimension_numbers = #tpu.dot_dimension_numbers<[1], [0], [0], [1], [0, 0, 1, 1], [], []>} : vector<8x8xf32>, vector<8x128xf32>, vector<8x128xf32> -> vector<8x128xf32>
    %15 = arith.addf %13, %14 : vector<8x128xf32>
    %c0_14 = arith.constant 0 : index
    %c0_15 = arith.constant 0 : index
    %16 = vector.load %arg7[%c0_14, %c0_15] : memref<8x128xf32, #tpu.memory_space<vmem>>, vector<8x128xf32>
    tpu.vector_store %arg7[%c0_14, %c0_15], %15 {strides = array<i32>} : memref<8x128xf32, #tpu.memory_space<vmem>>, vector<8x128xf32>,
    return
  }
  func.func @transform_0(%arg0: i32) -> (i32, i32) {
    %c0_i32 = arith.constant 0 : i32
    %c0_i32_0 = arith.constant 0 : i32
    return %c0_i32, %arg0 : i32, i32
  }
  func.func @transform_1(%arg0: i32) -> (i32, i32) {
    %c0_i32 = arith.constant 0 : i32
    %c0_i32_0 = arith.constant 0 : i32
    %c0_i32_1 = arith.constant 0 : i32
    return %c0_i32, %c0_i32_0 : i32, i32
  }
  func.func @transform_2(%arg0: i32) -> (i32, i32) {
    %c0_i32 = arith.constant 0 : i32
    %c0_i32_0 = arith.constant 0 : i32
    %c0_i32_1 = arith.constant 0 : i32
    return %c0_i32, %c0_i32_0 : i32, i32
  }
  func.func @transform_3(%arg0: i32) -> (i32, i32) {
    %c0_i32 = arith.constant 0 : i32
    %c0_i32_0 = arith.constant 0 : i32
    %c0_i32_1 = arith.constant 0 : i32
    return %c0_i32, %c0_i32_0 : i32, i32
  }
  func.func @transform_4(%arg0: i32) -> (i32, i32) {
    %c0_i32 = arith.constant 0 : i32
    %c0_i32_0 = arith.constant 0 : i32
    %c0_i32_1 = arith.constant 0 : i32
    return %c0_i32, %c0_i32_0 : i32, i32
  }
  func.func @transform_5(%arg0: i32) -> (i32, i32) {
    %c0_i32 = arith.constant 0 : i32
    %c0_i32_0 = arith.constant 0 : i32
    %c0_i32_1 = arith.constant 0 : i32
    return %c0_i32, %c0_i32_0 : i32, i32
  }
  func.func @transform_6(%arg0: i32) -> (i32, i32) {
    %c0_i32 = arith.constant 0 : i32
    %c0_i32_0 = arith.constant 0 : i32
    return %c0_i32, %arg0 : i32, i32
  }
}

</mosaic_0001>

<llo_original>
// kernel: tpu_custom_call.1
$region0: #{tpu_custom_call.1}
  #allocation0 [shape = 'u32[]', space=smem, size = 0x4, offset = 0x4, fixed_abs, tag = 'smem constant byte address 0x4 - core index']
  #allocation1 [shape = 'u32[72,128]{1,0:T(1,128)}', space=vmem, size = 0x9000, scoped, tag = 'internal scratch']
  %s0 = inlined_call_operand.vmem [shape: f32[8,128], index: 0, kind: input, shape index: {}]
  %s1 = inlined_call_operand.vmem [shape: f32[50,8], index: 1, kind: input, shape index: {}]
  %s2 = inlined_call_operand.vmem [shape: f32[50,50], index: 2, kind: input, shape index: {}]
  %s3 = inlined_call_operand.vmem [shape: f32[50,1], index: 3, kind: input, shape index: {}]
  %s4 = inlined_call_operand.vmem [shape: f32[8,50], index: 4, kind: input, shape index: {}]
  %s5 = inlined_call_operand.vmem [shape: f32[8,8], index: 5, kind: input, shape index: {}]
  %s6 = inlined_call_operand.hbm [shape: f32[8,128], index: 6, kind: output, shape index: {}]
  %s7 = sld [smem:[#allocation0]]
  $region34: #{tpu_custom_call.1} parent=0
    _
  %s9 = ssub.s32 1, %s7
  %s10 = scalar_select 0, %s9, %s7
  $region1: #{tpu_custom_call.1} parent=0
    #allocation2 [shape = 'u8[4096]{0}', space=vmem, size = 0x1000, scoped, tag = 'output window, operand 0, single buffered']
    #allocation3 [shape = 's32[1]{0}', space=sflag, size = 0x4, scoped, tag = 'scoped memory for tpu_custom_call.1']
    %11 = vsyncpa [#allocation3], 0
    // Predicated region
    $region2: #{tpu_custom_call.1} parent=1 // pred_check
      _
    $region3: #{tpu_custom_call.1} parent=1 // pred_check_branch
      %13 = sbr.rel (0) target = $region5
    $region4: #{tpu_custom_call.1} parent=1 // pred_region
      _
    $region5: #{tpu_custom_call.1} parent=1 // pred_fallthru
      _
    // Predicated region
    $region6: #{tpu_custom_call.1} parent=1 // pred_check
      _
    $region7: #{tpu_custom_call.1} parent=1 // pred_check_branch
      %15 = sbr.rel (0) target = $region9
    $region8: #{tpu_custom_call.1} parent=1 // pred_region
      _
    $region9: #{tpu_custom_call.1} parent=1 // pred_fallthru
      _
    // Predicated region
    $region10: #{tpu_custom_call.1} parent=1 // pred_check
      _
    $region11: #{tpu_custom_call.1} parent=1 // pred_check_branch
      %17 = sbr.rel (0) target = $region13
    $region12: #{tpu_custom_call.1} parent=1 // pred_region
      _
    $region13: #{tpu_custom_call.1} parent=1 // pred_fallthru
      _
    // Predicated region
    $region14: #{tpu_custom_call.1} parent=1 // pred_check
      _
    $region15: #{tpu_custom_call.1} parent=1 // pred_check_branch
      %19 = sbr.rel (0) target = $region17
    $region16: #{tpu_custom_call.1} parent=1 // pred_region
      _
    $region17: #{tpu_custom_call.1} parent=1 // pred_fallthru
      _
    // Predicated region
    $region18: #{tpu_custom_call.1} parent=1 // pred_check
      _
    $region19: #{tpu_custom_call.1} parent=1 // pred_check_branch
      %21 = sbr.rel (0) target = $region21
    $region20: #{tpu_custom_call.1} parent=1 // pred_region
      _
    $region21: #{tpu_custom_call.1} parent=1 // pred_fallthru
      _
    // Predicated region
    $region22: #{tpu_custom_call.1} parent=1 // pred_check
      _
    $region23: #{tpu_custom_call.1} parent=1 // pred_check_branch
      %23 = sbr.rel (0) target = $region25
    $region24: #{tpu_custom_call.1} parent=1 // pred_region
      _
    $region25: #{tpu_custom_call.1} parent=1 // pred_fallthru
      _
    %v24 = vld [vmem:[%s0] sm:$0xff]
    %v25 = vld [vmem:[%s3] sm:$0xff]
    %v26 = vld [vmem:[%s3 + $0x8] sm:$0xff]
    %v27 = vld [vmem:[%s3 + $0x10] sm:$0xff]
    %v28 = vld [vmem:[%s3 + $0x18] sm:$0xff]
    %v29 = vld [vmem:[%s3 + $0x20] sm:$0xff]
    %v30 = vld [vmem:[%s3 + $0x28] sm:$0xff]
    %v31 = vld [vmem:[%s3 + $0x30] sm:$0x3]
    %33 = vset.pattern.permute.xlu0 0
    %34 = vperm.xlu0 %33, %v25
    %v35 = vpop.permute.xlu0 %34
    %38 = vset.pattern.permute.xlu0 0
    %39 = vperm.xlu0 %38, %v26
    %v40 = vpop.permute.xlu0 %39
    %43 = vset.pattern.permute.xlu0 0
    %44 = vperm.xlu0 %43, %v27
    %v45 = vpop.permute.xlu0 %44
    %48 = vset.pattern.permute.xlu0 0
    %49 = vperm.xlu0 %48, %v28
    %v50 = vpop.permute.xlu0 %49
    %53 = vset.pattern.permute.xlu0 0
    %54 = vperm.xlu0 %53, %v29
    %v55 = vpop.permute.xlu0 %54
    %58 = vset.pattern.permute.xlu0 0
    %59 = vperm.xlu0 %58, %v30
    %v60 = vpop.permute.xlu0 %59
    %63 = vset.pattern.permute.xlu0 0
    %64 = vperm.xlu0 %63, %v31
    %v65 = vpop.permute.xlu0 %64
    %v67 = vld [vmem:[%s1] sm:$0xff]
    %v68 = vld [vmem:[%s1 + $0x8] sm:$0xff]
    %v69 = vld [vmem:[%s1 + $0x10] sm:$0xff]
    %v70 = vld [vmem:[%s1 + $0x18] sm:$0xff]
    %v71 = vld [vmem:[%s1 + $0x20] sm:$0xff]
    %v72 = vld [vmem:[%s1 + $0x28] sm:$0xff]
    %v73 = vld [vmem:[%s1 + $0x30] sm:$0x3]
    %v74 = vld [vmem:[%s2] sm:$0xff]
    %v75 = vld [vmem:[%s2 + $0x8] sm:$0xff]
    %v76 = vld [vmem:[%s2 + $0x10] sm:$0xff]
    %v77 = vld [vmem:[%s2 + $0x18] sm:$0xff]
    %v78 = vld [vmem:[%s2 + $0x20] sm:$0xff]
    %v79 = vld [vmem:[%s2 + $0x28] sm:$0xff]
    %v80 = vld [vmem:[%s2 + $0x30] sm:$0x3]
    %v81 = vld [vmem:[%s4] sm:$0xff]
    %v82 = vld [vmem:[%s5] sm:$0xff]
    %vm83 = vcmask 64512
    %v85 = vsel %vm83, %v67, 0
    %v88 = vsel %vm83, %v68, 0
    %v91 = vsel %vm83, %v69, 0
    %v94 = vsel %vm83, %v70, 0
    %v97 = vsel %vm83, %v71, 0
    %v100 = vsel %vm83, %v72, 0
    %v103 = vsel %vm83, %v73, 0
    %105 = vmatpush.msra.mxu0 0.0
    %106 = vmatpush.msra.mxu0 0.0
    %107 = vmatpush.msra.mxu0 0.0
    %108 = vmatpush.msra.mxu0 0.0
    %109 = vmatpush.msra.mxu0 0.0
    %110 = vmatpush.msra.mxu0 0.0
    %111 = vmatpush.msra.mxu0 0.0
    %112 = vmatpush.msra.mxu0 0.0
    %113 = vmatpush.msra.mxu0 0.0
    %114 = vmatpush.msra.mxu0 0.0
    %115 = vmatpush.msra.mxu0 0.0
    %116 = vmatpush.msra.mxu0 0.0
    %117 = vmatpush.msra.mxu0 0.0
    %118 = vmatpush.msra.mxu0 0.0
    %119 = vmatpush.msra.mxu0 0.0
    %120 = vmatpush.msra.mxu0 %v24
    %121 = vmatmul.f32.gmra.mxu0 %v85
    %v122 = vpop.f32.mrf.mxu0
    %v123 = vadd.f32 0.0, %v122
    %124 = vmatmul.f32.gmra.mxu0 %v88
    %v125 = vpop.f32.mrf.mxu0
    %v126 = vadd.f32 0.0, %v125
    %127 = vmatmul.f32.gmra.mxu0 %v91
    %v128 = vpop.f32.mrf.mxu0
    %v129 = vadd.f32 0.0, %v128
    %130 = vmatmul.f32.gmra.mxu0 %v94
    %v131 = vpop.f32.mrf.mxu0
    %v132 = vadd.f32 0.0, %v131
    %133 = vmatmul.f32.gmra.mxu0 %v97
    %v134 = vpop.f32.mrf.mxu0
    %v135 = vadd.f32 0.0, %v134
    %136 = vmatmul.f32.gmra.mxu0 %v100
    %v137 = vpop.f32.mrf.mxu0
    %v138 = vadd.f32 0.0, %v137
    %139 = vmatmul.f32.gmra.mxu0 %v103
    %v140 = vpop.f32.mrf.mxu0
    %v141 = vadd.f32 0.0, %v140
    %142 = vdwg.mxu0
    %v143 = vtanh.pop %v123
    %v144 = vtanh.pop %v126
    %v145 = vtanh.pop %v129
    %v146 = vtanh.pop %v132
    %v147 = vtanh.pop %v135
    %v148 = vtanh.pop %v138
    %v149 = vtanh.pop %v141
    %vm150 = vcmask 408576
    %v152 = vsel %vm150, %v74, 0
    %v155 = vsel %vm150, %v75, 0
    %v158 = vsel %vm150, %v76, 0
    %v161 = vsel %vm150, %v77, 0
    %v164 = vsel %vm150, %v78, 0
    %v167 = vsel %vm150, %v79, 0
    %v170 = vsel %vm150, %v80, 0
    %vm172 = vcmask 1041408
    %v174 = vsel %vm172, %v149, 0
    %176 = vmatpush.msra.mxu0 0.0
    %177 = vmatpush.msra.mxu0 0.0
    %178 = vmatpush.msra.mxu0 0.0
    %179 = vmatpush.msra.mxu0 0.0
    %180 = vmatpush.msra.mxu0 0.0
    %181 = vmatpush.msra.mxu0 0.0
    %182 = vmatpush.msra.mxu0 0.0
    %183 = vmatpush.msra.mxu0 0.0
    %184 = vmatpush.msra.mxu0 0.0
    %185 = vmatpush.msra.mxu0 %v174
    %186 = vmatpush.msra.mxu0 %v148
    %187 = vmatpush.msra.mxu0 %v147
    %188 = vmatpush.msra.mxu0 %v146
    %189 = vmatpush.msra.mxu0 %v145
    %190 = vmatpush.msra.mxu0 %v144
    %191 = vmatpush.msra.mxu0 %v143
    %192 = vmatmul.f32.gmra.mxu0 %v152
    %v193 = vpop.f32.mrf.mxu0
    %v194 = vadd.f32 %v35, %v193
    %195 = vmatmul.f32.gmra.mxu0 %v155
    %v196 = vpop.f32.mrf.mxu0
    %v197 = vadd.f32 %v40, %v196
    %198 = vmatmul.f32.gmra.mxu0 %v158
    %v199 = vpop.f32.mrf.mxu0
    %v200 = vadd.f32 %v45, %v199
    %201 = vmatmul.f32.gmra.mxu0 %v161
    %v202 = vpop.f32.mrf.mxu0
    %v203 = vadd.f32 %v50, %v202
    %204 = vmatmul.f32.gmra.mxu0 %v164
    %v205 = vpop.f32.mrf.mxu0
    %v206 = vadd.f32 %v55, %v205
    %207 = vmatmul.f32.gmra.mxu0 %v167
    %v208 = vpop.f32.mrf.mxu0
    %v209 = vadd.f32 %v60, %v208
    %210 = vmatmul.f32.gmra.mxu0 %v170
    %v211 = vpop.f32.mrf.mxu0
    %v212 = vadd.f32 %v65, %v211
    %213 = vdwg.mxu0
    %v214 = vtanh.pop %v194
    %v215 = vtanh.pop %v197
    %v216 = vtanh.pop %v200
    %v217 = vtanh.pop %v203
    %v218 = vtanh.pop %v206
    %v219 = vtanh.pop %v209
    %v220 = vtanh.pop %v212
    %v222 = vsel %vm83, %v82, 0
    %224 = vmatpush.msra.mxu0 0.0
    %225 = vmatpush.msra.mxu0 0.0
    %226 = vmatpush.msra.mxu0 0.0
    %227 = vmatpush.msra.mxu0 0.0
    %228 = vmatpush.msra.mxu0 0.0
    %229 = vmatpush.msra.mxu0 0.0
    %230 = vmatpush.msra.mxu0 0.0
    %231 = vmatpush.msra.mxu0 0.0
    %232 = vmatpush.msra.mxu0 0.0
    %233 = vmatpush.msra.mxu0 0.0
    %234 = vmatpush.msra.mxu0 0.0
    %235 = vmatpush.msra.mxu0 0.0
    %236 = vmatpush.msra.mxu0 0.0
    %237 = vmatpush.msra.mxu0 0.0
    %238 = vmatpush.msra.mxu0 0.0
    %239 = vmatpush.msra.mxu0 %v24
    %240 = vmatmul.f32.gmra.mxu0 %v222
    %v241 = vpop.f32.mrf.mxu0
    %v242 = vadd.f32 0.0, %v241
    %243 = vdwg.mxu0
    %v245 = vsel %vm150, %v81, 0
    %v248 = vsel %vm172, %v220, 0
    %250 = vmatpush.msra.mxu0 0.0
    %251 = vmatpush.msra.mxu0 0.0
    %252 = vmatpush.msra.mxu0 0.0
    %253 = vmatpush.msra.mxu0 0.0
    %254 = vmatpush.msra.mxu0 0.0
    %255 = vmatpush.msra.mxu0 0.0
    %256 = vmatpush.msra.mxu0 0.0
    %257 = vmatpush.msra.mxu0 0.0
    %258 = vmatpush.msra.mxu0 0.0
    %259 = vmatpush.msra.mxu0 %v248
    %260 = vmatpush.msra.mxu0 %v219
    %261 = vmatpush.msra.mxu0 %v218
    %262 = vmatpush.msra.mxu0 %v217
    %263 = vmatpush.msra.mxu0 %v216
    %264 = vmatpush.msra.mxu0 %v215
    %265 = vmatpush.msra.mxu0 %v214
    %266 = vmatmul.f32.gmra.mxu0 %v245
    %v267 = vpop.f32.mrf.mxu0
    %v268 = vadd.f32 %v242, %v267
    %269 = vdwg.mxu0
    %270 = vst [vmem:[#allocation2] sm:$0xff] %v268
    // Predicated region
    $region26: #{tpu_custom_call.1} parent=1 // pred_check
      _
    $region27: #{tpu_custom_call.1} parent=1 // pred_check_branch
      %272 = sbr.rel (0) target = $region29
    $region28: #{tpu_custom_call.1} parent=1 // pred_region
      %274 = vsyncadd [#allocation3], 0
      %s276 = sshll.u32 [#allocation2], 4
      %s277 = int_to_ptr.vmem [resolvable:$true] %s276
      %s278 = sshll.u32 %s6, 4
      %s279 = int_to_ptr.hbm [resolvable:$true] %s278
      %281 = dma.vmem_to_hbm [thread:$0]  %s277, 128, %s279, [#allocation3]
    $region29: #{tpu_custom_call.1} parent=1 // pred_fallthru
      _
    // Predicated region
    $region30: #{tpu_custom_call.1} parent=1 // pred_check
      _
    $region31: #{tpu_custom_call.1} parent=1 // pred_check_branch
      %283 = sbr.rel (0) target = $region33
    $region32: #{tpu_custom_call.1} parent=1 // pred_region
      %285 = dma.done [#allocation3], 128
    $region33: #{tpu_custom_call.1} parent=1 // pred_fallthru
      _
    %286 = vsyncpa [#allocation3], 1

</llo_original>
